<compile_context>
chip_gen: v5e
topology: v5e:2x2
jax: 0.10.0
libtpu: 0.0.40
codegen_flags: <defaults>
</compile_context>

<pallas_src>
import functools

import jax
import jax.numpy as jnp
import numpy as np
from jax.experimental import pallas as pl
from jax.experimental.pallas import tpu as pltpu


def _round_up(x: int, m: int) -> int:
    return ((x + m - 1) // m) * m


@functools.lru_cache(maxsize=None)
def _pool_matrices(l_in: int, l_out: int):
    """Adaptive-avg-pool as a dense [L_in, L_out] matrix (PyTorch window rules)
    plus its transpose, built once per shape and cached on device."""
    w = np.zeros((l_in, l_out), dtype=np.float32)
    for j in range(l_out):
        start = (j * l_in) // l_out
        end = -((-(j + 1) * l_in) // l_out)  # ceil((j+1)*l_in / l_out)
        w[start:end, j] = 1.0 / (end - start)
    return jnp.asarray(w), jnp.asarray(np.ascontiguousarray(w.T))


@functools.lru_cache(maxsize=None)
def _vmem_limit_bytes() -> int:
    """Generation-aware scoped-VMEM limit (v5e/v6e: ~96 MiB, v7x: ~48 MiB)."""
    try:
        cap = int(pltpu.get_tpu_info().vmem_capacity_bytes)
    except Exception:
        cap = 64 * 1024 * 1024  # conservative (v7x physical VMEM per TC)
    return min((cap * 3) // 4, 100 * 1024 * 1024)


def _choose_tile_m(m_rows: int, l_in: int, l_out: int, itemsize: int,
                   vmem_limit_bytes: int) -> int:
    """Largest row tile (multiple of 8) whose footprint fits the scoped VMEM
    limit, accounting for the resident W/W^T and internal scratch, and capped
    so the row grid keeps at least 2 (large M: 4) steps for pipelining /
    megacore sharding."""
    w_bytes = 2 * l_in * l_out * 4                 # W + W^T, single-buffered f32
    reserve = 4 * 1024 * 1024                      # Mosaic internal scratch etc.
    budget = max(vmem_limit_bytes - w_bytes - reserve, 2 * 1024 * 1024)

    per_row = (
        2 * itemsize * (2 * l_in + l_out)          # double-buffered a, out, r DMAs
        + 4 * (2 * l_in + 2 * l_out)               # f32 temporaries (z, s, c, a*c)
    )
    tm = budget // per_row
    tm = max(8, (tm // 8) * 8)
    tm = min(tm, 2048)                             # diminishing returns past this

    # Keep >=2 grid steps (>=4 when M is large) so the "parallel" axis can
    # overlap DMA/compute and shard across v7x's two TensorCores.
    if m_rows >= 16:
        tm = min(tm, _round_up(-(-m_rows // 2), 8))
    if m_rows >= 4 * 256:
        tm = min(tm, _round_up(-(-m_rows // 4), 8))

    # Never exceed the (8-rounded) row count.
    tm = min(tm, max(8, _round_up(m_rows, 8)))
    return tm


def _resident_spec(shape):
    """BlockSpec for a grid-invariant, VMEM-resident constant matrix."""
    index_map = lambda i: (0, 0)
    try:
        # Single buffer: the block index never changes, one copy suffices.
        return pl.BlockSpec(shape, index_map, pipeline_mode=pl.Buffered(1))
    except Exception:  # API without pipeline_mode -> default double buffering
        return pl.BlockSpec(shape, index_map)


def _lrp_avgpool_kernel(a_ref, r_ref, w_ref, wt_ref, out_ref, *, eps: float):
    a = a_ref[...]                                            # [tm, L_in], native dtype
    # z = adaptive_avg_pool1d(a) + eps
    z = jnp.dot(a, w_ref[...], preferred_element_type=jnp.float32) + eps
    # s = (r / z).detach()
    s = r_ref[...].astype(jnp.float32) / z                    # [tm, L_out]
    # c = grad_a[ sum(z * s) ] with s constant  ==  s @ W^T
    c = jnp.dot(s, wt_ref[...], preferred_element_type=jnp.float32)  # [tm, L_in]
    # out = a * c
    out_ref[...] = (a.astype(jnp.float32) * c).astype(out_ref.dtype)


def lrp_adaptive_avg_pool1d(a: jax.Array, r: jax.Array, *, eps: float = 1e-5,
                            top_k: float = 0.0) -> jax.Array:
    """a: [N, C, L_in], r: [N, C, L_out] -> relevance [N, C, L_in]."""
    # TODO(synk): top_k relevance_filter not implemented (module default 0.0).
    assert top_k == 0.0, "top_k filtering not implemented"

    n, c, l_in = a.shape
    n2, c2, l_out = r.shape
    assert (n, c) == (n2, c2)
    m = n * c

    # Contiguous reshapes -> metadata-only, no extra HBM pass.
    a2 = a.reshape(m, l_in)
    r2 = r.reshape(m, l_out)

    w, wt = _pool_matrices(l_in, l_out)

    itemsize = np.dtype(a.dtype).itemsize
    vmem_limit = _vmem_limit_bytes()
    tm = _choose_tile_m(m, l_in, l_out, itemsize, vmem_limit)
    grid_m = pl.cdiv(m, tm)

    out2 = pl.pallas_call(
        functools.partial(_lrp_avgpool_kernel, eps=eps),
        out_shape=jax.ShapeDtypeStruct((m, l_in), a.dtype),
        grid=(grid_m,),
        in_specs=[
            pl.BlockSpec((tm, l_in), lambda i: (i, 0)),    # a rows (tiled)
            pl.BlockSpec((tm, l_out), lambda i: (i, 0)),   # r rows (tiled)
            _resident_spec((l_in, l_out)),                 # W   (VMEM resident)
            _resident_spec((l_out, l_in)),                 # W^T (VMEM resident)
        ],
        out_specs=pl.BlockSpec((tm, l_in), lambda i: (i, 0)),
        compiler_params=pltpu.CompilerParams(
            dimension_semantics=("parallel",),
            vmem_limit_bytes=vmem_limit,
        ),
    )(a2, r2, w, wt)

    return out2.reshape(n, c, l_in)


def _reference(a, r, eps):
    """Pure-JAX reference for sanity checking."""
    l_in = a.shape[-1]
    l_out = r.shape[-1]
    w, _ = _pool_matrices(l_in, l_out)
    z = jnp.einsum("ncl,lo->nco", a, w) + eps
    s = r / z
    cgrad = jnp.einsum("nco,lo->ncl", s, w)
    return a * cgrad


if __name__ == "__main__":
    key = jax.random.PRNGKey(0)
    k_a, k_r, k_a2, k_r2 = jax.random.split(key, 4)

    # Primary small case (uniform windows, single grid step).
    N, C, L_IN, L_OUT = 2, 4, 16, 8
    a = jax.random.normal(k_a, (N, C, L_IN), dtype=jnp.float32)
    r = jax.random.normal(k_r, (N, C, L_OUT), dtype=jnp.float32)
    out = jax.block_until_ready(lrp_adaptive_avg_pool1d(a, r, eps=1e-5))
    np.testing.assert_allclose(np.asarray(out), np.asarray(_reference(a, r, 1e-5)),
                               rtol=1e-5, atol=1e-5)

    # Secondary case: non-uniform (overlapping) windows, ragged last row tile,
    # 2-step "parallel" grid.
    N2, C2, L_IN2, L_OUT2 = 3, 6, 20, 6
    a_b = jax.random.normal(k_a2, (N2, C2, L_IN2), dtype=jnp.float32)
    r_b = jax.random.normal(k_r2, (N2, C2, L_OUT2), dtype=jnp.float32)
    out_b = jax.block_until_ready(lrp_adaptive_avg_pool1d(a_b, r_b, eps=1e-5))
    np.testing.assert_allclose(np.asarray(out_b),
                               np.asarray(_reference(a_b, r_b, 1e-5)),
                               rtol=1e-5, atol=1e-5)

    print("KERNEL_OK")
</pallas_src>

<mosaic_0001>
module attributes {stable_mosaic.version = 11 : i64} {
  func.func @_lrp_avgpool_kernel(%arg0: i32, %arg1: memref<8x16xf32, #tpu.memory_space<vmem>>, %arg2: memref<8x8xf32, #tpu.memory_space<vmem>>, %arg3: memref<16x8xf32, #tpu.memory_space<vmem>>, %arg4: memref<8x16xf32, #tpu.memory_space<vmem>>, %arg5: memref<8x16xf32, #tpu.memory_space<vmem>>) attributes {dimension_semantics = [#tpu.dimension_semantics<parallel>], iteration_bounds = array<i64: 1>, scalar_prefetch = 0 : i64, scratch_operands = 0 : i64, tpu.core_type = #tpu.core_type<tc>, window_params = [{transform_indices = @transform_0, window_bounds = array<i64: 8, 16>}, {transform_indices = @transform_1, window_bounds = array<i64: 8, 8>}, {pipeline_mode = #tpu.pipeline_mode<synchronous>, transform_indices = @transform_2, window_bounds = array<i64: 16, 8>}, {pipeline_mode = #tpu.pipeline_mode<synchronous>, transform_indices = @transform_3, window_bounds = array<i64: 8, 16>}, {transform_indices = @transform_4, window_bounds = array<i64: 8, 16>}]} {
    %c0 = arith.constant 0 : index
    %c0_0 = arith.constant 0 : index
    %0 = vector.load %arg1[%c0, %c0_0] : memref<8x16xf32, #tpu.memory_space<vmem>>, vector<8x16xf32>
    %c0_1 = arith.constant 0 : index
    %c0_2 = arith.constant 0 : index
    %1 = vector.load %arg3[%c0_1, %c0_2] : memref<16x8xf32, #tpu.memory_space<vmem>>, vector<16x8xf32>
    %cst = arith.constant dense<0.000000e+00> : vector<8x8xf32>
    %2 = tpu.matmul %0, %1, %cst {dimension_numbers = #tpu.dot_dimension_numbers<[1], [0], [0], [1], [0, 0, 1, 1], [], []>} : vector<8x16xf32>, vector<16x8xf32>, vector<8x8xf32> -> vector<8x8xf32>
    %cst_3 = arith.constant 9.99999974E-6 : f32
    %3 = vector.broadcast %cst_3 : f32 to vector<8x8xf32>
    %4 = arith.addf %2, %3 : vector<8x8xf32>
    %c0_4 = arith.constant 0 : index
    %c0_5 = arith.constant 0 : index
    %5 = vector.load %arg2[%c0_4, %c0_5] : memref<8x8xf32, #tpu.memory_space<vmem>>, vector<8x8xf32>
    %6 = arith.divf %5, %4 : vector<8x8xf32>
    %c0_6 = arith.constant 0 : index
    %c0_7 = arith.constant 0 : index
    %7 = vector.load %arg4[%c0_6, %c0_7] : memref<8x16xf32, #tpu.memory_space<vmem>>, vector<8x16xf32>
    %cst_8 = arith.constant dense<0.000000e+00> : vector<8x16xf32>
    %8 = tpu.matmul %6, %7, %cst_8 {dimension_numbers = #tpu.dot_dimension_numbers<[1], [0], [0], [1], [0, 0, 1, 1], [], []>} : vector<8x8xf32>, vector<8x16xf32>, vector<8x16xf32> -> vector<8x16xf32>
    %9 = arith.mulf %0, %8 : vector<8x16xf32>
    %c0_9 = arith.constant 0 : index
    %c0_10 = arith.constant 0 : index
    %10 = vector.load %arg5[%c0_9, %c0_10] : memref<8x16xf32, #tpu.memory_space<vmem>>, vector<8x16xf32>
    tpu.vector_store %arg5[%c0_9, %c0_10], %9 {strides = array<i32>} : memref<8x16xf32, #tpu.memory_space<vmem>>, vector<8x16xf32>,
    return
  }
  func.func @transform_0(%arg0: i32) -> (i32, i32) {
    %c0_i32 = arith.constant 0 : i32
    %c0_i32_0 = arith.constant 0 : i32
    return %arg0, %c0_i32 : i32, i32
  }
  func.func @transform_1(%arg0: i32) -> (i32, i32) {
    %c0_i32 = arith.constant 0 : i32
    %c0_i32_0 = arith.constant 0 : i32
    return %arg0, %c0_i32 : i32, i32
  }
  func.func @transform_2(%arg0: i32) -> (i32, i32) {
    %c0_i32 = arith.constant 0 : i32
    %c0_i32_0 = arith.constant 0 : i32
    %c0_i32_1 = arith.constant 0 : i32
    return %c0_i32, %c0_i32_0 : i32, i32
  }
  func.func @transform_3(%arg0: i32) -> (i32, i32) {
    %c0_i32 = arith.constant 0 : i32
    %c0_i32_0 = arith.constant 0 : i32
    %c0_i32_1 = arith.constant 0 : i32
    return %c0_i32, %c0_i32_0 : i32, i32
  }
  func.func @transform_4(%arg0: i32) -> (i32, i32) {
    %c0_i32 = arith.constant 0 : i32
    %c0_i32_0 = arith.constant 0 : i32
    return %arg0, %c0_i32 : i32, i32
  }
}

</mosaic_0001>

<llo_original>
// kernel: tpu_custom_call.1
$region0: #{tpu_custom_call.1}
  #allocation0 [shape = 'u32[]', space=smem, size = 0x4, offset = 0x4, fixed_abs, tag = 'smem constant byte address 0x4 - core index']
  #allocation1 [shape = 'u32[72,128]{1,0:T(1,128)}', space=vmem, size = 0x9000, scoped, tag = 'internal scratch']
  %s0 = inlined_call_operand.vmem [shape: f32[8,16], index: 0, kind: input, shape index: {}]
  %s1 = inlined_call_operand.vmem [shape: f32[8,8], index: 1, kind: input, shape index: {}]
  %s2 = inlined_call_operand.vmem [shape: f32[16,8], index: 2, kind: input, shape index: {}]
  %s3 = inlined_call_operand.vmem [shape: f32[8,16], index: 3, kind: input, shape index: {}]
  %s4 = inlined_call_operand.hbm [shape: f32[8,16], index: 4, kind: output, shape index: {}]
  %s5 = sld [smem:[#allocation0]]
  $region26: #{tpu_custom_call.1} parent=0
    _
  %s7 = ssub.s32 1, %s5
  %s8 = scalar_select 0, %s7, %s5
  $region1: #{tpu_custom_call.1} parent=0
    #allocation2 [shape = 'u8[4096]{0}', space=vmem, size = 0x1000, scoped, tag = 'output window, operand 0, single buffered']
    #allocation3 [shape = 's32[1]{0}', space=sflag, size = 0x4, scoped, tag = 'scoped memory for tpu_custom_call.1']
    %9 = vsyncpa [#allocation3], 0
    // Predicated region
    $region2: #{tpu_custom_call.1} parent=1 // pred_check
      _
    $region3: #{tpu_custom_call.1} parent=1 // pred_check_branch
      %11 = sbr.rel (0) target = $region5
    $region4: #{tpu_custom_call.1} parent=1 // pred_region
      _
    $region5: #{tpu_custom_call.1} parent=1 // pred_fallthru
      _
    // Predicated region
    $region6: #{tpu_custom_call.1} parent=1 // pred_check
      _
    $region7: #{tpu_custom_call.1} parent=1 // pred_check_branch
      %13 = sbr.rel (0) target = $region9
    $region8: #{tpu_custom_call.1} parent=1 // pred_region
      _
    $region9: #{tpu_custom_call.1} parent=1 // pred_fallthru
      _
    // Predicated region
    $region10: #{tpu_custom_call.1} parent=1 // pred_check
      _
    $region11: #{tpu_custom_call.1} parent=1 // pred_check_branch
      %15 = sbr.rel (0) target = $region13
    $region12: #{tpu_custom_call.1} parent=1 // pred_region
      _
    $region13: #{tpu_custom_call.1} parent=1 // pred_fallthru
      _
    // Predicated region
    $region14: #{tpu_custom_call.1} parent=1 // pred_check
      _
    $region15: #{tpu_custom_call.1} parent=1 // pred_check_branch
      %17 = sbr.rel (0) target = $region17
    $region16: #{tpu_custom_call.1} parent=1 // pred_region
      _
    $region17: #{tpu_custom_call.1} parent=1 // pred_fallthru
      _
    %v18 = vld [vmem:[%s0] sm:$0xff]
    %v19 = vld [vmem:[%s2] sm:$0xff]
    %v20 = vld [vmem:[%s2 + $0x8] sm:$0xff]
    %vm21 = vcmask 130048
    %v23 = vsel %vm21, %v18, 0
    %25 = vmatpush.msra.mxu0 0.0
    %26 = vmatpush.msra.mxu0 0.0
    %27 = vmatpush.msra.mxu0 0.0
    %28 = vmatpush.msra.mxu0 0.0
    %29 = vmatpush.msra.mxu0 0.0
    %30 = vmatpush.msra.mxu0 0.0
    %31 = vmatpush.msra.mxu0 0.0
    %32 = vmatpush.msra.mxu0 0.0
    %33 = vmatpush.msra.mxu0 0.0
    %34 = vmatpush.msra.mxu0 0.0
    %35 = vmatpush.msra.mxu0 0.0
    %36 = vmatpush.msra.mxu0 0.0
    %37 = vmatpush.msra.mxu0 0.0
    %38 = vmatpush.msra.mxu0 0.0
    %39 = vmatpush.msra.mxu0 %v20
    %40 = vmatpush.msra.mxu0 %v19
    %41 = vmatmul.f32.gmra.mxu0 %v23
    %v42 = vpop.f32.mrf.mxu0
    %v43 = vadd.f32 1e-05, %v42
    %44 = vdwg.mxu0
    %v45 = vld [vmem:[%s1] sm:$0xff]
    %v46 = vrcp.pop %v43
    %v47 = vmul.f32 %v43, %v46
    %v48 = vsub.f32 1.0, %v47
    %v49 = vmul.f32 %v46, %v48
    %v50 = vadd.f32 %v46, %v49
    %vm51 = vweird.f32 %v43
    %vm52 = vweird.f32 %v46
    %vm53 = vmor %vm51, %vm52
    %v54 = vsel %vm53, %v46, %v50
    %v55 = vand.u32 2147483647, %v43
    %vm56 = vcmp.eq.f32.partialorder %v55, 8.507059e+37
    %v57 = vand.u32 %v43, 2147483648
    %v58 = vor.u32 1.1754944e-38, %v57
    %v59 = vsel %vm56, %v58, %v54
    %v60 = vmul.f32 %v45, %v59
    %v61 = vld [vmem:[%s3] sm:$0xff]
    %vm62 = vcmask 64512
    %v64 = vsel %vm62, %v60, 0
    %66 = vmatpush.msra.mxu0 0.0
    %67 = vmatpush.msra.mxu0 0.0
    %68 = vmatpush.msra.mxu0 0.0
    %69 = vmatpush.msra.mxu0 0.0
    %70 = vmatpush.msra.mxu0 0.0
    %71 = vmatpush.msra.mxu0 0.0
    %72 = vmatpush.msra.mxu0 0.0
    %73 = vmatpush.msra.mxu0 0.0
    %74 = vmatpush.msra.mxu0 0.0
    %75 = vmatpush.msra.mxu0 0.0
    %76 = vmatpush.msra.mxu0 0.0
    %77 = vmatpush.msra.mxu0 0.0
    %78 = vmatpush.msra.mxu0 0.0
    %79 = vmatpush.msra.mxu0 0.0
    %80 = vmatpush.msra.mxu0 0.0
    %81 = vmatpush.msra.mxu0 %v61
    %82 = vmatmul.f32.gmra.mxu0 %v64
    %v83 = vpop.f32.mrf.mxu0
    %v84 = vadd.f32 0.0, %v83
    %85 = vdwg.mxu0
    %v86 = vmul.f32 %v18, %v84
    %87 = vst.msk [vmem:[#allocation2] sm:$0xff] %vm21, %v86
    // Predicated region
    $region18: #{tpu_custom_call.1} parent=1 // pred_check
      _
    $region19: #{tpu_custom_call.1} parent=1 // pred_check_branch
      %89 = sbr.rel (0) target = $region21
    $region20: #{tpu_custom_call.1} parent=1 // pred_region
      %91 = vsyncadd [#allocation3], 0
      %s93 = sshll.u32 [#allocation2], 4
      %s94 = int_to_ptr.vmem [resolvable:$true] %s93
      %s95 = sshll.u32 %s4, 4
      %s96 = int_to_ptr.hbm [resolvable:$true] %s95
      %98 = dma.vmem_to_hbm [thread:$0]  %s94, 128, %s96, [#allocation3]
    $region21: #{tpu_custom_call.1} parent=1 // pred_fallthru
      _
    // Predicated region
    $region22: #{tpu_custom_call.1} parent=1 // pred_check
      _
    $region23: #{tpu_custom_call.1} parent=1 // pred_check_branch
      %100 = sbr.rel (0) target = $region25
    $region24: #{tpu_custom_call.1} parent=1 // pred_region
      %102 = dma.done [#allocation3], 128
    $region25: #{tpu_custom_call.1} parent=1 // pred_fallthru
      _
    %103 = vsyncpa [#allocation3], 1

</llo_original>
